<compile_context>
chip_gen: v5e
topology: v5e:2x2
jax: 0.10.0
libtpu: 0.0.40
codegen_flags: <defaults>
</compile_context>

<pallas_src>
import jax
import jax.numpy as jnp
from jax.experimental import pallas as pl
from jax.experimental.pallas import tpu as pltpu


def _net_kernel(x_ref, w1_ref, b1_ref, w2_ref, b2_ref, o_ref):
    # fc1: [TB, 768] @ [768, 400] — bf16 operands, f32 accumulation on the MXU.
    h = jnp.dot(x_ref[...], w1_ref[...], preferred_element_type=jnp.float32)
    h = jnp.maximum(h + b1_ref[...], 0.0)                     # bias + ReLU (f32, VPU)
    # fc2: [TB, 400] @ [400, 10] — h stays in vregs/VMEM, never round-trips to HBM.
    y = jnp.dot(h.astype(jnp.bfloat16), w2_ref[...], preferred_element_type=jnp.float32)
    y = y + b2_ref[...]
    o_ref[...] = jax.nn.sigmoid(y).astype(o_ref.dtype)        # stable sigmoid (exp -> EUP)


def _round_down8(n):
    return max(8, (n // 8) * 8)


def net_forward(x, w1, b1, w2, b2, *, tile_b=512):
    """x: [B, 768] bf16; w1: [768, 400] bf16; b1: [1, 400] f32; w2: [400, 10] bf16; b2: [1, 10] f32."""
    B, in_features = x.shape
    out_features = w2.shape[1]

    # Batch tile: <= tile_b rows, multiple of 8 (sublane rule) unless it equals the full batch.
    tb = min(tile_b, B)
    if B >= 16:
        # Guarantee >= 2 grid steps so both v7x TensorCores get work.
        tb = min(tb, _round_down8(pl.cdiv(B, 2)))
    if tb != B and tb % 8 != 0:
        tb = _round_down8(tb)
    grid = (pl.cdiv(B, tb),)

    return pl.pallas_call(
        _net_kernel,
        out_shape=jax.ShapeDtypeStruct((B, out_features), jnp.float32),
        grid_spec=pltpu.PrefetchScalarGridSpec(
            num_scalar_prefetch=0,
            grid=grid,
            in_specs=[
                # x tile marches along the batch axis (pipelined DMA overlaps compute).
                pl.BlockSpec((tb, in_features), lambda i: (i, 0)),
                # Weights / biases: constant block index => loaded once, VMEM-resident.
                pl.BlockSpec(w1.shape, lambda i: (0, 0)),
                pl.BlockSpec(b1.shape, lambda i: (0, 0)),
                pl.BlockSpec(w2.shape, lambda i: (0, 0)),
                pl.BlockSpec(b2.shape, lambda i: (0, 0)),
            ],
            out_specs=pl.BlockSpec((tb, out_features), lambda i: (i, 0)),
        ),
        compiler_params=pltpu.CompilerParams(
            # Independent batch tiles: lets Mosaic shard the grid across v7x's 2 TensorCores.
            dimension_semantics=("parallel",),
            # Explicit scoped-VMEM headroom (v5e default is 16 MiB; footprint here is a few MB).
            vmem_limit_bytes=32 << 20,
        ),
    )(x, w1, b1, w2, b2)


def init_params(key):
    """Deterministic init mirroring nn.Linear default (uniform +/- 1/sqrt(fan_in)).

    Weights are returned pre-transposed ([in, out]) and cast to bf16 for HBM/MXU;
    biases stay f32.
    """
    k1, k2, k3, k4 = jax.random.split(key, 4)
    in1, out1 = 768, 400
    in2, out2 = 400, 10
    lim1 = 1.0 / jnp.sqrt(jnp.float32(in1))
    lim2 = 1.0 / jnp.sqrt(jnp.float32(in2))
    w1 = jax.random.uniform(k1, (in1, out1), jnp.float32, -lim1, lim1).astype(jnp.bfloat16)
    b1 = jax.random.uniform(k2, (1, out1), jnp.float32, -lim1, lim1)
    w2 = jax.random.uniform(k3, (in2, out2), jnp.float32, -lim2, lim2).astype(jnp.bfloat16)
    b2 = jax.random.uniform(k4, (1, out2), jnp.float32, -lim2, lim2)
    return w1, b1, w2, b2


def reference_forward(x, w1, b1, w2, b2):
    """Pure-JAX reference with the same bf16-input / f32-accumulate numerics as the kernel."""
    # TODO(synk): bf16 weights/activations drift ~1e-2 relative vs the true f32 PyTorch model;
    # this reference matches the kernel's numerics, not f32 PyTorch.
    h = jnp.dot(x, w1, preferred_element_type=jnp.float32) + b1
    h = jnp.maximum(h, 0.0)
    y = jnp.dot(h.astype(jnp.bfloat16), w2, preferred_element_type=jnp.float32) + b2
    return jax.nn.sigmoid(y)


if __name__ == "__main__":
    key = jax.random.PRNGKey(0)
    kx, kp = jax.random.split(key)

    batch = 8  # small demo batch; in_features fixed at 768 by the module
    # x produced directly in bf16 (no wrapper-side astype in the hot path).
    x = jax.random.normal(kx, (batch, 768), jnp.bfloat16)
    w1, b1, w2, b2 = init_params(kp)

    out = jax.block_until_ready(net_forward(x, w1, b1, w2, b2))

    ref = reference_forward(x, w1, b1, w2, b2)
    assert out.shape == (batch, 10)
    assert out.dtype == jnp.float32
    assert jnp.allclose(out, ref, atol=2e-3, rtol=2e-3), "mismatch vs reference"

    print("KERNEL_OK")
</pallas_src>

<mosaic_0001>
module attributes {stable_mosaic.version = 11 : i64} {
  func.func @_net_kernel(%arg0: i32, %arg1: memref<8x768xbf16, #tpu.memory_space<vmem>>, %arg2: memref<768x400xbf16, #tpu.memory_space<vmem>>, %arg3: memref<1x400xf32, #tpu.memory_space<vmem>>, %arg4: memref<400x10xbf16, #tpu.memory_space<vmem>>, %arg5: memref<1x10xf32, #tpu.memory_space<vmem>>, %arg6: memref<8x10xf32, #tpu.memory_space<vmem>>) attributes {dimension_semantics = [#tpu.dimension_semantics<parallel>], iteration_bounds = array<i64: 1>, scalar_prefetch = 0 : i64, scratch_operands = 0 : i64, tpu.core_type = #tpu.core_type<tc>, window_params = [{transform_indices = @transform_0, window_bounds = array<i64: 8, 768>}, {pipeline_mode = #tpu.pipeline_mode<synchronous>, transform_indices = @transform_1, window_bounds = array<i64: 768, 400>}, {pipeline_mode = #tpu.pipeline_mode<synchronous>, transform_indices = @transform_2, window_bounds = array<i64: 1, 400>}, {pipeline_mode = #tpu.pipeline_mode<synchronous>, transform_indices = @transform_3, window_bounds = array<i64: 400, 10>}, {pipeline_mode = #tpu.pipeline_mode<synchronous>, transform_indices = @transform_4, window_bounds = array<i64: 1, 10>}, {transform_indices = @transform_5, window_bounds = array<i64: 8, 10>}]} {
    %c0 = arith.constant 0 : index
    %c0_0 = arith.constant 0 : index
    %0 = vector.load %arg1[%c0, %c0_0] : memref<8x768xbf16, #tpu.memory_space<vmem>>, vector<8x768xbf16>
    %c0_1 = arith.constant 0 : index
    %c0_2 = arith.constant 0 : index
    %1 = vector.load %arg2[%c0_1, %c0_2] : memref<768x400xbf16, #tpu.memory_space<vmem>>, vector<768x400xbf16>
    %cst = arith.constant dense<0.000000e+00> : vector<8x400xf32>
    %2 = tpu.matmul %0, %1, %cst {dimension_numbers = #tpu.dot_dimension_numbers<[1], [0], [0], [1], [0, 0, 1, 1], [], []>} : vector<8x768xbf16>, vector<768x400xbf16>, vector<8x400xf32> -> vector<8x400xf32>
    %c0_3 = arith.constant 0 : index
    %c0_4 = arith.constant 0 : index
    %3 = vector.load %arg3[%c0_3, %c0_4] : memref<1x400xf32, #tpu.memory_space<vmem>>, vector<1x400xf32>
    %4 = vector.broadcast %3 : vector<1x400xf32> to vector<8x400xf32>
    %5 = arith.addf %2, %4 : vector<8x400xf32>
    %cst_5 = arith.constant 0.000000e+00 : f32
    %6 = vector.broadcast %cst_5 : f32 to vector<8x400xf32>
    %7 = arith.maximumf %5, %6 : vector<8x400xf32>
    %8 = arith.truncf %7 : vector<8x400xf32> to vector<8x400xbf16>
    %c0_6 = arith.constant 0 : index
    %c0_7 = arith.constant 0 : index
    %9 = vector.load %arg4[%c0_6, %c0_7] : memref<400x10xbf16, #tpu.memory_space<vmem>>, vector<400x10xbf16>
    %cst_8 = arith.constant dense<0.000000e+00> : vector<8x10xf32>
    %10 = tpu.matmul %8, %9, %cst_8 {dimension_numbers = #tpu.dot_dimension_numbers<[1], [0], [0], [1], [0, 0, 1, 1], [], []>} : vector<8x400xbf16>, vector<400x10xbf16>, vector<8x10xf32> -> vector<8x10xf32>
    %c0_9 = arith.constant 0 : index
    %c0_10 = arith.constant 0 : index
    %11 = vector.load %arg5[%c0_9, %c0_10] : memref<1x10xf32, #tpu.memory_space<vmem>>, vector<1x10xf32>
    %12 = vector.broadcast %11 : vector<1x10xf32> to vector<8x10xf32>
    %13 = arith.addf %10, %12 : vector<8x10xf32>
    %14 = arith.negf %13 : vector<8x10xf32>
    %15 = math.exp %14 : vector<8x10xf32>
    %cst_11 = arith.constant 1.000000e+00 : f32
    %16 = vector.broadcast %cst_11 : f32 to vector<8x10xf32>
    %17 = arith.addf %16, %15 : vector<8x10xf32>
    %18 = arith.divf %16, %17 : vector<8x10xf32>
    %c0_12 = arith.constant 0 : index
    %c0_13 = arith.constant 0 : index
    %19 = vector.load %arg6[%c0_12, %c0_13] : memref<8x10xf32, #tpu.memory_space<vmem>>, vector<8x10xf32>
    tpu.vector_store %arg6[%c0_12, %c0_13], %18 {strides = array<i32>} : memref<8x10xf32, #tpu.memory_space<vmem>>, vector<8x10xf32>,
    return
  }
  func.func @transform_0(%arg0: i32) -> (i32, i32) {
    %c0_i32 = arith.constant 0 : i32
    %c0_i32_0 = arith.constant 0 : i32
    return %arg0, %c0_i32 : i32, i32
  }
  func.func @transform_1(%arg0: i32) -> (i32, i32) {
    %c0_i32 = arith.constant 0 : i32
    %c0_i32_0 = arith.constant 0 : i32
    %c0_i32_1 = arith.constant 0 : i32
    return %c0_i32, %c0_i32_0 : i32, i32
  }
  func.func @transform_2(%arg0: i32) -> (i32, i32) {
    %c0_i32 = arith.constant 0 : i32
    %c0_i32_0 = arith.constant 0 : i32
    %c0_i32_1 = arith.constant 0 : i32
    return %c0_i32, %c0_i32_0 : i32, i32
  }
  func.func @transform_3(%arg0: i32) -> (i32, i32) {
    %c0_i32 = arith.constant 0 : i32
    %c0_i32_0 = arith.constant 0 : i32
    %c0_i32_1 = arith.constant 0 : i32
    return %c0_i32, %c0_i32_0 : i32, i32
  }
  func.func @transform_4(%arg0: i32) -> (i32, i32) {
    %c0_i32 = arith.constant 0 : i32
    %c0_i32_0 = arith.constant 0 : i32
    %c0_i32_1 = arith.constant 0 : i32
    return %c0_i32, %c0_i32_0 : i32, i32
  }
  func.func @transform_5(%arg0: i32) -> (i32, i32) {
    %c0_i32 = arith.constant 0 : i32
    %c0_i32_0 = arith.constant 0 : i32
    return %arg0, %c0_i32 : i32, i32
  }
}

</mosaic_0001>

<llo_original>
// kernel: tpu_custom_call.1
$region0: #{tpu_custom_call.1}
  #allocation0 [shape = 'u32[]', space=smem, size = 0x4, offset = 0x4, fixed_abs, tag = 'smem constant byte address 0x4 - core index']
  #allocation1 [shape = 'u32[72,128]{1,0:T(1,128)}', space=vmem, size = 0x9000, scoped, tag = 'internal scratch']
  %s0 = inlined_call_operand.vmem [shape: bf16[8,768], index: 0, kind: input, shape index: {}]
  %s1 = inlined_call_operand.vmem [shape: bf16[768,400], index: 1, kind: input, shape index: {}]
  %s2 = inlined_call_operand.vmem [shape: f32[1,400], index: 2, kind: input, shape index: {}]
  %s3 = inlined_call_operand.vmem [shape: bf16[400,10], index: 3, kind: input, shape index: {}]
  %s4 = inlined_call_operand.vmem [shape: f32[1,10], index: 4, kind: input, shape index: {}]
  %s5 = inlined_call_operand.hbm [shape: f32[8,10], index: 5, kind: output, shape index: {}]
  %s6 = sld [smem:[#allocation0]]
  $region30: #{tpu_custom_call.1} parent=0
    _
  %s8 = ssub.s32 1, %s6
  %s9 = scalar_select 0, %s8, %s6
  $region1: #{tpu_custom_call.1} parent=0
    #allocation2 [shape = 'u8[4096]{0}', space=vmem, size = 0x1000, scoped, tag = 'output window, operand 0, single buffered']
    #allocation3 [shape = 's32[1]{0}', space=sflag, size = 0x4, scoped, tag = 'scoped memory for tpu_custom_call.1']
    %10 = vsyncpa [#allocation3], 0
    // Predicated region
    $region2: #{tpu_custom_call.1} parent=1 // pred_check
      _
    $region3: #{tpu_custom_call.1} parent=1 // pred_check_branch
      %12 = sbr.rel (0) target = $region5
    $region4: #{tpu_custom_call.1} parent=1 // pred_region
      _
    $region5: #{tpu_custom_call.1} parent=1 // pred_fallthru
      _
    // Predicated region
    $region6: #{tpu_custom_call.1} parent=1 // pred_check
      _
    $region7: #{tpu_custom_call.1} parent=1 // pred_check_branch
      %14 = sbr.rel (0) target = $region9
    $region8: #{tpu_custom_call.1} parent=1 // pred_region
      _
    $region9: #{tpu_custom_call.1} parent=1 // pred_fallthru
      _
    // Predicated region
    $region10: #{tpu_custom_call.1} parent=1 // pred_check
      _
    $region11: #{tpu_custom_call.1} parent=1 // pred_check_branch
      %16 = sbr.rel (0) target = $region13
    $region12: #{tpu_custom_call.1} parent=1 // pred_region
      _
    $region13: #{tpu_custom_call.1} parent=1 // pred_fallthru
      _
    // Predicated region
    $region14: #{tpu_custom_call.1} parent=1 // pred_check
      _
    $region15: #{tpu_custom_call.1} parent=1 // pred_check_branch
      %18 = sbr.rel (0) target = $region17
    $region16: #{tpu_custom_call.1} parent=1 // pred_region
      _
    $region17: #{tpu_custom_call.1} parent=1 // pred_fallthru
      _
    // Predicated region
    $region18: #{tpu_custom_call.1} parent=1 // pred_check
      _
    $region19: #{tpu_custom_call.1} parent=1 // pred_check_branch
      %20 = sbr.rel (0) target = $region21
    $region20: #{tpu_custom_call.1} parent=1 // pred_region
      _
    $region21: #{tpu_custom_call.1} parent=1 // pred_fallthru
      _
    %v22 = vld [vmem:[%s0] sm:$0xff]
    %v23 = vld [vmem:[%s0 + $0x8] sm:$0xff]
    %v24 = vld [vmem:[%s0 + $0x10] sm:$0xff]
    %v25 = vld [vmem:[%s1] sm:$0xff]
    %v26 = vld [vmem:[%s1 + $0x8] sm:$0xff]
    %v27 = vld [vmem:[%s1 + $0x10] sm:$0xff]
    %v28 = vld [vmem:[%s1 + $0x18] sm:$0xff]
    %v29 = vld [vmem:[%s1 + $0x20] sm:$0xff]
    %v30 = vld [vmem:[%s1 + $0x28] sm:$0xff]
    %v31 = vld [vmem:[%s1 + $0x30] sm:$0xff]
    %v32 = vld [vmem:[%s1 + $0x38] sm:$0xff]
    %v33 = vld [vmem:[%s1 + $0x40] sm:$0xff]
    %v34 = vld [vmem:[%s1 + $0x48] sm:$0xff]
    %v35 = vld [vmem:[%s1 + $0x50] sm:$0xff]
    %v36 = vld [vmem:[%s1 + $0x58] sm:$0xff]
    %v37 = vld [vmem:[%s1 + $0x60] sm:$0xff]
    %v38 = vld [vmem:[%s1 + $0x68] sm:$0xff]
    %v39 = vld [vmem:[%s1 + $0x70] sm:$0xff]
    %v40 = vld [vmem:[%s1 + $0x78] sm:$0xff]
    %v41 = vld [vmem:[%s1 + $0x80] sm:$0xff]
    %v42 = vld [vmem:[%s1 + $0x88] sm:$0xff]
    %v43 = vld [vmem:[%s1 + $0x90] sm:$0xff]
    %v44 = vld [vmem:[%s1 + $0x98] sm:$0xff]
    %v45 = vld [vmem:[%s1 + $0xa0] sm:$0xff]
    %v46 = vld [vmem:[%s1 + $0xa8] sm:$0xff]
    %v47 = vld [vmem:[%s1 + $0xb0] sm:$0xff]
    %v48 = vld [vmem:[%s1 + $0xb8] sm:$0xff]
    %v49 = vld [vmem:[%s1 + $0xc0] sm:$0xff]
    %v50 = vld [vmem:[%s1 + $0xc8] sm:$0xff]
    %v51 = vld [vmem:[%s1 + $0xd0] sm:$0xff]
    %v52 = vld [vmem:[%s1 + $0xd8] sm:$0xff]
    %v53 = vld [vmem:[%s1 + $0xe0] sm:$0xff]
    %v54 = vld [vmem:[%s1 + $0xe8] sm:$0xff]
    %v55 = vld [vmem:[%s1 + $0xf0] sm:$0xff]
    %v56 = vld [vmem:[%s1 + $0xf8] sm:$0xff]
    %v57 = vld [vmem:[%s1 + $0x100] sm:$0xff]
    %v58 = vld [vmem:[%s1 + $0x108] sm:$0xff]
    %v59 = vld [vmem:[%s1 + $0x110] sm:$0xff]
    %v60 = vld [vmem:[%s1 + $0x118] sm:$0xff]
    %v61 = vld [vmem:[%s1 + $0x120] sm:$0xff]
    %v62 = vld [vmem:[%s1 + $0x128] sm:$0xff]
    %v63 = vld [vmem:[%s1 + $0x130] sm:$0xff]
    %v64 = vld [vmem:[%s1 + $0x138] sm:$0xff]
    %v65 = vld [vmem:[%s1 + $0x140] sm:$0xff]
    %v66 = vld [vmem:[%s1 + $0x148] sm:$0xff]
    %v67 = vld [vmem:[%s1 + $0x150] sm:$0xff]
    %v68 = vld [vmem:[%s1 + $0x158] sm:$0xff]
    %v69 = vld [vmem:[%s1 + $0x160] sm:$0xff]
    %v70 = vld [vmem:[%s1 + $0x168] sm:$0xff]
    %v71 = vld [vmem:[%s1 + $0x170] sm:$0xff]
    %v72 = vld [vmem:[%s1 + $0x178] sm:$0xff]
    %v73 = vld [vmem:[%s1 + $0x180] sm:$0xff]
    %v74 = vld [vmem:[%s1 + $0x188] sm:$0xff]
    %v75 = vld [vmem:[%s1 + $0x190] sm:$0xff]
    %v76 = vld [vmem:[%s1 + $0x198] sm:$0xff]
    %v77 = vld [vmem:[%s1 + $0x1a0] sm:$0xff]
    %v78 = vld [vmem:[%s1 + $0x1a8] sm:$0xff]
    %v79 = vld [vmem:[%s1 + $0x1b0] sm:$0xff]
    %v80 = vld [vmem:[%s1 + $0x1b8] sm:$0xff]
    %v81 = vld [vmem:[%s1 + $0x1c0] sm:$0xff]
    %v82 = vld [vmem:[%s1 + $0x1c8] sm:$0xff]
    %v83 = vld [vmem:[%s1 + $0x1d0] sm:$0xff]
    %v84 = vld [vmem:[%s1 + $0x1d8] sm:$0xff]
    %v85 = vld [vmem:[%s1 + $0x1e0] sm:$0xff]
    %v86 = vld [vmem:[%s1 + $0x1e8] sm:$0xff]
    %v87 = vld [vmem:[%s1 + $0x1f0] sm:$0xff]
    %v88 = vld [vmem:[%s1 + $0x1f8] sm:$0xff]
    %v89 = vld [vmem:[%s1 + $0x200] sm:$0xff]
    %v90 = vld [vmem:[%s1 + $0x208] sm:$0xff]
    %v91 = vld [vmem:[%s1 + $0x210] sm:$0xff]
    %v92 = vld [vmem:[%s1 + $0x218] sm:$0xff]
    %v93 = vld [vmem:[%s1 + $0x220] sm:$0xff]
    %v94 = vld [vmem:[%s1 + $0x228] sm:$0xff]
    %v95 = vld [vmem:[%s1 + $0x230] sm:$0xff]
    %v96 = vld [vmem:[%s1 + $0x238] sm:$0xff]
    %v97 = vld [vmem:[%s1 + $0x240] sm:$0xff]
    %v98 = vld [vmem:[%s1 + $0x248] sm:$0xff]
    %v99 = vld [vmem:[%s1 + $0x250] sm:$0xff]
    %v100 = vld [vmem:[%s1 + $0x258] sm:$0xff]
    %v101 = vld [vmem:[%s1 + $0x260] sm:$0xff]
    %v102 = vld [vmem:[%s1 + $0x268] sm:$0xff]
    %v103 = vld [vmem:[%s1 + $0x270] sm:$0xff]
    %v104 = vld [vmem:[%s1 + $0x278] sm:$0xff]
    %v105 = vld [vmem:[%s1 + $0x280] sm:$0xff]
    %v106 = vld [vmem:[%s1 + $0x288] sm:$0xff]
    %v107 = vld [vmem:[%s1 + $0x290] sm:$0xff]
    %v108 = vld [vmem:[%s1 + $0x298] sm:$0xff]
    %v109 = vld [vmem:[%s1 + $0x2a0] sm:$0xff]
    %v110 = vld [vmem:[%s1 + $0x2a8] sm:$0xff]
    %v111 = vld [vmem:[%s1 + $0x2b0] sm:$0xff]
    %v112 = vld [vmem:[%s1 + $0x2b8] sm:$0xff]
    %v113 = vld [vmem:[%s1 + $0x2c0] sm:$0xff]
    %v114 = vld [vmem:[%s1 + $0x2c8] sm:$0xff]
    %v115 = vld [vmem:[%s1 + $0x2d0] sm:$0xff]
    %v116 = vld [vmem:[%s1 + $0x2d8] sm:$0xff]
    %v117 = vld [vmem:[%s1 + $0x2e0] sm:$0xff]
    %v118 = vld [vmem:[%s1 + $0x2e8] sm:$0xff]
    %v119 = vld [vmem:[%s1 + $0x2f0] sm:$0xff]
    %v120 = vld [vmem:[%s1 + $0x2f8] sm:$0xff]
    %v121 = vld [vmem:[%s1 + $0x300] sm:$0xff]
    %v122 = vld [vmem:[%s1 + $0x308] sm:$0xff]
    %v123 = vld [vmem:[%s1 + $0x310] sm:$0xff]
    %v124 = vld [vmem:[%s1 + $0x318] sm:$0xff]
    %v125 = vld [vmem:[%s1 + $0x320] sm:$0xff]
    %v126 = vld [vmem:[%s1 + $0x328] sm:$0xff]
    %v127 = vld [vmem:[%s1 + $0x330] sm:$0xff]
    %v128 = vld [vmem:[%s1 + $0x338] sm:$0xff]
    %v129 = vld [vmem:[%s1 + $0x340] sm:$0xff]
    %v130 = vld [vmem:[%s1 + $0x348] sm:$0xff]
    %v131 = vld [vmem:[%s1 + $0x350] sm:$0xff]
    %v132 = vld [vmem:[%s1 + $0x358] sm:$0xff]
    %v133 = vld [vmem:[%s1 + $0x360] sm:$0xff]
    %v134 = vld [vmem:[%s1 + $0x368] sm:$0xff]
    %v135 = vld [vmem:[%s1 + $0x370] sm:$0xff]
    %v136 = vld [vmem:[%s1 + $0x378] sm:$0xff]
    %v137 = vld [vmem:[%s1 + $0x380] sm:$0xff]
    %v138 = vld [vmem:[%s1 + $0x388] sm:$0xff]
    %v139 = vld [vmem:[%s1 + $0x390] sm:$0xff]
    %v140 = vld [vmem:[%s1 + $0x398] sm:$0xff]
    %v141 = vld [vmem:[%s1 + $0x3a0] sm:$0xff]
    %v142 = vld [vmem:[%s1 + $0x3a8] sm:$0xff]
    %v143 = vld [vmem:[%s1 + $0x3b0] sm:$0xff]
    %v144 = vld [vmem:[%s1 + $0x3b8] sm:$0xff]
    %v145 = vld [vmem:[%s1 + $0x3c0] sm:$0xff]
    %v146 = vld [vmem:[%s1 + $0x3c8] sm:$0xff]
    %v147 = vld [vmem:[%s1 + $0x3d0] sm:$0xff]
    %v148 = vld [vmem:[%s1 + $0x3d8] sm:$0xff]
    %v149 = vld [vmem:[%s1 + $0x3e0] sm:$0xff]
    %v150 = vld [vmem:[%s1 + $0x3e8] sm:$0xff]
    %v151 = vld [vmem:[%s1 + $0x3f0] sm:$0xff]
    %v152 = vld [vmem:[%s1 + $0x3f8] sm:$0xff]
    %v153 = vld [vmem:[%s1 + $0x400] sm:$0xff]
    %v154 = vld [vmem:[%s1 + $0x408] sm:$0xff]
    %v155 = vld [vmem:[%s1 + $0x410] sm:$0xff]
    %v156 = vld [vmem:[%s1 + $0x418] sm:$0xff]
    %v157 = vld [vmem:[%s1 + $0x420] sm:$0xff]
    %v158 = vld [vmem:[%s1 + $0x428] sm:$0xff]
    %v159 = vld [vmem:[%s1 + $0x430] sm:$0xff]
    %v160 = vld [vmem:[%s1 + $0x438] sm:$0xff]
    %v161 = vld [vmem:[%s1 + $0x440] sm:$0xff]
    %v162 = vld [vmem:[%s1 + $0x448] sm:$0xff]
    %v163 = vld [vmem:[%s1 + $0x450] sm:$0xff]
    %v164 = vld [vmem:[%s1 + $0x458] sm:$0xff]
    %v165 = vld [vmem:[%s1 + $0x460] sm:$0xff]
    %v166 = vld [vmem:[%s1 + $0x468] sm:$0xff]
    %v167 = vld [vmem:[%s1 + $0x470] sm:$0xff]
    %v168 = vld [vmem:[%s1 + $0x478] sm:$0xff]
    %v169 = vld [vmem:[%s1 + $0x480] sm:$0xff]
    %v170 = vld [vmem:[%s1 + $0x488] sm:$0xff]
    %v171 = vld [vmem:[%s1 + $0x490] sm:$0xff]
    %v172 = vld [vmem:[%s1 + $0x498] sm:$0xff]
    %v173 = vld [vmem:[%s1 + $0x4a0] sm:$0xff]
    %v174 = vld [vmem:[%s1 + $0x4a8] sm:$0xff]
    %v175 = vld [vmem:[%s1 + $0x4b0] sm:$0xff]
    %v176 = vld [vmem:[%s1 + $0x4b8] sm:$0xff]
    %v177 = vld [vmem:[%s1 + $0x4c0] sm:$0xff]
    %v178 = vld [vmem:[%s1 + $0x4c8] sm:$0xff]
    %v179 = vld [vmem:[%s1 + $0x4d0] sm:$0xff]
    %v180 = vld [vmem:[%s1 + $0x4d8] sm:$0xff]
    %v181 = vld [vmem:[%s1 + $0x4e0] sm:$0xff]
    %v182 = vld [vmem:[%s1 + $0x4e8] sm:$0xff]
    %v183 = vld [vmem:[%s1 + $0x4f0] sm:$0xff]
    %v184 = vld [vmem:[%s1 + $0x4f8] sm:$0xff]
    %v185 = vld [vmem:[%s1 + $0x500] sm:$0xff]
    %v186 = vld [vmem:[%s1 + $0x508] sm:$0xff]
    %v187 = vld [vmem:[%s1 + $0x510] sm:$0xff]
    %v188 = vld [vmem:[%s1 + $0x518] sm:$0xff]
    %v189 = vld [vmem:[%s1 + $0x520] sm:$0xff]
    %v190 = vld [vmem:[%s1 + $0x528] sm:$0xff]
    %v191 = vld [vmem:[%s1 + $0x530] sm:$0xff]
    %v192 = vld [vmem:[%s1 + $0x538] sm:$0xff]
    %v193 = vld [vmem:[%s1 + $0x540] sm:$0xff]
    %v194 = vld [vmem:[%s1 + $0x548] sm:$0xff]
    %v195 = vld [vmem:[%s1 + $0x550] sm:$0xff]
    %v196 = vld [vmem:[%s1 + $0x558] sm:$0xff]
    %v197 = vld [vmem:[%s1 + $0x560] sm:$0xff]
    %v198 = vld [vmem:[%s1 + $0x568] sm:$0xff]
    %v199 = vld [vmem:[%s1 + $0x570] sm:$0xff]
    %v200 = vld [vmem:[%s1 + $0x578] sm:$0xff]
    %v201 = vld [vmem:[%s1 + $0x580] sm:$0xff]
    %v202 = vld [vmem:[%s1 + $0x588] sm:$0xff]
    %v203 = vld [vmem:[%s1 + $0x590] sm:$0xff]
    %v204 = vld [vmem:[%s1 + $0x598] sm:$0xff]
    %v205 = vld [vmem:[%s1 + $0x5a0] sm:$0xff]
    %v206 = vld [vmem:[%s1 + $0x5a8] sm:$0xff]
    %v207 = vld [vmem:[%s1 + $0x5b0] sm:$0xff]
    %v208 = vld [vmem:[%s1 + $0x5b8] sm:$0xff]
    %v209 = vld [vmem:[%s1 + $0x5c0] sm:$0xff]
    %v210 = vld [vmem:[%s1 + $0x5c8] sm:$0xff]
    %v211 = vld [vmem:[%s1 + $0x5d0] sm:$0xff]
    %v212 = vld [vmem:[%s1 + $0x5d8] sm:$0xff]
    %v213 = vld [vmem:[%s1 + $0x5e0] sm:$0xff]
    %v214 = vld [vmem:[%s1 + $0x5e8] sm:$0xff]
    %v215 = vld [vmem:[%s1 + $0x5f0] sm:$0xff]
    %v216 = vld [vmem:[%s1 + $0x5f8] sm:$0xff]
    %v217 = vld [vmem:[%s2] sm:$0xf]
    %v219 = vperm.slane %v217, 0
    %v220 = vperm.slane %v217, 1
    %v221 = vperm.slane %v217, 2
    %v222 = vperm.slane %v217, 3
    %v230 = vunpack.c.l.b16 %v22
    %v231 = vunpack.c.h.b16 %v22
    %v232 = vunpack.c.l.b16 %v23
    %v233 = vunpack.c.h.b16 %v23
    %v234 = vunpack.c.l.b16 %v24
    %v235 = vunpack.c.h.b16 %v24
    %v236 = vpack.c.b16 %v230, %v230
    %v237 = vpack.c.b16 %v231, %v231
    %v238 = vpack.c.b16 %v232, %v232
    %v239 = vpack.c.b16 %v233, %v233
    %v240 = vpack.c.b16 %v234, %v234
    %v241 = vpack.c.b16 %v235, %v235
    %v440 = vunpack.c.l.b16 %v25
    %v441 = vunpack.c.h.b16 %v25
    %v442 = vunpack.c.l.b16 %v26
    %v443 = vunpack.c.h.b16 %v26
    %v444 = vunpack.c.l.b16 %v27
    %v445 = vunpack.c.h.b16 %v27
    %v446 = vunpack.c.l.b16 %v28
    %v447 = vunpack.c.h.b16 %v28
    %v448 = vunpack.c.l.b16 %v29
    %v449 = vunpack.c.h.b16 %v29
    %v450 = vunpack.c.l.b16 %v30
    %v451 = vunpack.c.h.b16 %v30
    %v452 = vunpack.c.l.b16 %v31
    %v453 = vunpack.c.h.b16 %v31
    %v454 = vunpack.c.l.b16 %v32
    %v455 = vunpack.c.h.b16 %v32
    %v456 = vunpack.c.l.b16 %v33
    %v457 = vunpack.c.h.b16 %v33
    %v458 = vunpack.c.l.b16 %v34
    %v459 = vunpack.c.h.b16 %v34
    %v460 = vunpack.c.l.b16 %v35
    %v461 = vunpack.c.h.b16 %v35
    %v462 = vunpack.c.l.b16 %v36
    %v463 = vunpack.c.h.b16 %v36
    %v464 = vunpack.c.l.b16 %v37
    %v465 = vunpack.c.h.b16 %v37
    %v466 = vunpack.c.l.b16 %v38
    %v467 = vunpack.c.h.b16 %v38
    %v468 = vunpack.c.l.b16 %v39
    %v469 = vunpack.c.h.b16 %v39
    %v470 = vunpack.c.l.b16 %v40
    %v471 = vunpack.c.h.b16 %v40
    %v472 = vunpack.c.l.b16 %v41
    %v473 = vunpack.c.h.b16 %v41
    %v474 = vunpack.c.l.b16 %v42
    %v475 = vunpack.c.h.b16 %v42
    %v476 = vunpack.c.l.b16 %v43
    %v477 = vunpack.c.h.b16 %v43
    %v478 = vunpack.c.l.b16 %v44
    %v479 = vunpack.c.h.b16 %v44
    %v480 = vunpack.c.l.b16 %v45
    %v481 = vunpack.c.h.b16 %v45
    %v482 = vunpack.c.l.b16 %v46
    %v483 = vunpack.c.h.b16 %v46
    %v484 = vunpack.c.l.b16 %v47
    %v485 = vunpack.c.h.b16 %v47
    %v486 = vunpack.c.l.b16 %v48
    %v487 = vunpack.c.h.b16 %v48
    %v488 = vunpack.c.l.b16 %v49
    %v489 = vunpack.c.h.b16 %v49
    %v490 = vunpack.c.l.b16 %v50
    %v491 = vunpack.c.h.b16 %v50
    %v492 = vunpack.c.l.b16 %v51
    %v493 = vunpack.c.h.b16 %v51
    %v494 = vunpack.c.l.b16 %v52
    %v495 = vunpack.c.h.b16 %v52
    %v496 = vunpack.c.l.b16 %v53
    %v497 = vunpack.c.h.b16 %v53
    %v498 = vunpack.c.l.b16 %v54
    %v499 = vunpack.c.h.b16 %v54
    %v500 = vunpack.c.l.b16 %v55
    %v501 = vunpack.c.h.b16 %v55
    %v502 = vunpack.c.l.b16 %v56
    %v503 = vunpack.c.h.b16 %v56
    %v504 = vunpack.c.l.b16 %v57
    %v505 = vunpack.c.h.b16 %v57
    %v506 = vunpack.c.l.b16 %v58
    %v507 = vunpack.c.h.b16 %v58
    %v508 = vunpack.c.l.b16 %v59
    %v509 = vunpack.c.h.b16 %v59
    %v510 = vunpack.c.l.b16 %v60
    %v511 = vunpack.c.h.b16 %v60
    %v512 = vunpack.c.l.b16 %v61
    %v513 = vunpack.c.h.b16 %v61
    %v514 = vunpack.c.l.b16 %v62
    %v515 = vunpack.c.h.b16 %v62
    %v516 = vunpack.c.l.b16 %v63
    %v517 = vunpack.c.h.b16 %v63
    %v518 = vunpack.c.l.b16 %v64
    %v519 = vunpack.c.h.b16 %v64
    %v520 = vunpack.c.l.b16 %v65
    %v521 = vunpack.c.h.b16 %v65
    %v522 = vunpack.c.l.b16 %v66
    %v523 = vunpack.c.h.b16 %v66
    %v524 = vunpack.c.l.b16 %v67
    %v525 = vunpack.c.h.b16 %v67
    %v526 = vunpack.c.l.b16 %v68
    %v527 = vunpack.c.h.b16 %v68
    %v528 = vunpack.c.l.b16 %v69
    %v529 = vunpack.c.h.b16 %v69
    %v530 = vunpack.c.l.b16 %v70
    %v531 = vunpack.c.h.b16 %v70
    %v532 = vunpack.c.l.b16 %v71
    %v533 = vunpack.c.h.b16 %v71
    %v534 = vunpack.c.l.b16 %v72
    %v535 = vunpack.c.h.b16 %v72
    %v536 = vunpack.c.l.b16 %v73
    %v537 = vunpack.c.h.b16 %v73
    %v538 = vunpack.c.l.b16 %v74
    %v539 = vunpack.c.h.b16 %v74
    %v540 = vunpack.c.l.b16 %v75
    %v541 = vunpack.c.h.b16 %v75
    %v542 = vunpack.c.l.b16 %v76
    %v543 = vunpack.c.h.b16 %v76
    %v544 = vunpack.c.l.b16 %v77
    %v545 = vunpack.c.h.b16 %v77
    %v546 = vunpack.c.l.b16 %v78
    %v547 = vunpack.c.h.b16 %v78
    %v548 = vunpack.c.l.b16 %v79
    %v549 = vunpack.c.h.b16 %v79
    %v550 = vunpack.c.l.b16 %v80
    %v551 = vunpack.c.h.b16 %v80
    %v552 = vunpack.c.l.b16 %v81
    %v553 = vunpack.c.h.b16 %v81
    %v554 = vunpack.c.l.b16 %v82
    %v555 = vunpack.c.h.b16 %v82
    %v556 = vunpack.c.l.b16 %v83
    %v557 = vunpack.c.h.b16 %v83
    %v558 = vunpack.c.l.b16 %v84
    %v559 = vunpack.c.h.b16 %v84
    %v560 = vunpack.c.l.b16 %v85
    %v561 = vunpack.c.h.b16 %v85
    %v562 = vunpack.c.l.b16 %v86
    %v563 = vunpack.c.h.b16 %v86
    %v564 = vunpack.c.l.b16 %v87
    %v565 = vunpack.c.h.b16 %v87
    %v566 = vunpack.c.l.b16 %v88
    %v567 = vunpack.c.h.b16 %v88
    %v568 = vunpack.c.l.b16 %v89
    %v569 = vunpack.c.h.b16 %v89
    %v570 = vunpack.c.l.b16 %v90
    %v571 = vunpack.c.h.b16 %v90
    %v572 = vunpack.c.l.b16 %v91
    %v573 = vunpack.c.h.b16 %v91
    %v574 = vunpack.c.l.b16 %v92
    %v575 = vunpack.c.h.b16 %v92
    %v576 = vunpack.c.l.b16 %v93
    %v577 = vunpack.c.h.b16 %v93
    %v578 = vunpack.c.l.b16 %v94
    %v579 = vunpack.c.h.b16 %v94
    %v580 = vunpack.c.l.b16 %v95
    %v581 = vunpack.c.h.b16 %v95
    %v582 = vunpack.c.l.b16 %v96
    %v583 = vunpack.c.h.b16 %v96
    %v584 = vunpack.c.l.b16 %v97
    %v585 = vunpack.c.h.b16 %v97
    %v586 = vunpack.c.l.b16 %v98
    %v587 = vunpack.c.h.b16 %v98
    %v588 = vunpack.c.l.b16 %v99
    %v589 = vunpack.c.h.b16 %v99
    %v590 = vunpack.c.l.b16 %v100
    %v591 = vunpack.c.h.b16 %v100
    %v592 = vunpack.c.l.b16 %v101
    %v593 = vunpack.c.h.b16 %v101
    %v594 = vunpack.c.l.b16 %v102
    %v595 = vunpack.c.h.b16 %v102
    %v596 = vunpack.c.l.b16 %v103
    %v597 = vunpack.c.h.b16 %v103
    %v598 = vunpack.c.l.b16 %v104
    %v599 = vunpack.c.h.b16 %v104
    %v600 = vunpack.c.l.b16 %v105
    %v601 = vunpack.c.h.b16 %v105
    %v602 = vunpack.c.l.b16 %v106
    %v603 = vunpack.c.h.b16 %v106
    %v604 = vunpack.c.l.b16 %v107
    %v605 = vunpack.c.h.b16 %v107
    %v606 = vunpack.c.l.b16 %v108
    %v607 = vunpack.c.h.b16 %v108
    %v608 = vunpack.c.l.b16 %v109
    %v609 = vunpack.c.h.b16 %v109
    %v610 = vunpack.c.l.b16 %v110
    %v611 = vunpack.c.h.b16 %v110
    %v612 = vunpack.c.l.b16 %v111
    %v613 = vunpack.c.h.b16 %v111
    %v614 = vunpack.c.l.b16 %v112
    %v615 = vunpack.c.h.b16 %v112
    %v616 = vunpack.c.l.b16 %v113
    %v617 = vunpack.c.h.b16 %v113
    %v618 = vunpack.c.l.b16 %v114
    %v619 = vunpack.c.h.b16 %v114
    %v620 = vunpack.c.l.b16 %v115
    %v621 = vunpack.c.h.b16 %v115
    %v622 = vunpack.c.l.b16 %v116
    %v623 = vunpack.c.h.b16 %v116
    %v624 = vunpack.c.l.b16 %v117
    %v625 = vunpack.c.h.b16 %v117
    %v626 = vunpack.c.l.b16 %v118
    %v627 = vunpack.c.h.b16 %v118
    %v628 = vunpack.c.l.b16 %v119
    %v629 = vunpack.c.h.b16 %v119
    %v630 = vunpack.c.l.b16 %v120
    %v631 = vunpack.c.h.b16 %v120
    %v632 = vunpack.c.l.b16 %v121
    %v633 = vunpack.c.h.b16 %v121
    %v634 = vunpack.c.l.b16 %v122
    %v635 = vunpack.c.h.b16 %v122
    %v636 = vunpack.c.l.b16 %v123
    %v637 = vunpack.c.h.b16 %v123
    %v638 = vunpack.c.l.b16 %v124
    %v639 = vunpack.c.h.b16 %v124
    %v640 = vunpack.c.l.b16 %v125
    %v641 = vunpack.c.h.b16 %v125
    %v642 = vunpack.c.l.b16 %v126
    %v643 = vunpack.c.h.b16 %v126
    %v644 = vunpack.c.l.b16 %v127
    %v645 = vunpack.c.h.b16 %v127
    %v646 = vunpack.c.l.b16 %v128
    %v647 = vunpack.c.h.b16 %v128
    %v648 = vunpack.c.l.b16 %v129
    %v649 = vunpack.c.h.b16 %v129
    %v650 = vunpack.c.l.b16 %v130
    %v651 = vunpack.c.h.b16 %v130
    %v652 = vunpack.c.l.b16 %v131
    %v653 = vunpack.c.h.b16 %v131
    %v654 = vunpack.c.l.b16 %v132
    %v655 = vunpack.c.h.b16 %v132
    %v656 = vunpack.c.l.b16 %v133
    %v657 = vunpack.c.h.b16 %v133
    %v658 = vunpack.c.l.b16 %v134
    %v659 = vunpack.c.h.b16 %v134
    %v660 = vunpack.c.l.b16 %v135
    %v661 = vunpack.c.h.b16 %v135
    %v662 = vunpack.c.l.b16 %v136
    %v663 = vunpack.c.h.b16 %v136
    %v664 = vunpack.c.l.b16 %v137
    %v665 = vunpack.c.h.b16 %v137
    %v666 = vunpack.c.l.b16 %v138
    %v667 = vunpack.c.h.b16 %v138
    %v668 = vunpack.c.l.b16 %v139
    %v669 = vunpack.c.h.b16 %v139
    %v670 = vunpack.c.l.b16 %v140
    %v671 = vunpack.c.h.b16 %v140
    %v672 = vunpack.c.l.b16 %v141
    %v673 = vunpack.c.h.b16 %v141
    %v674 = vunpack.c.l.b16 %v142
    %v675 = vunpack.c.h.b16 %v142
    %v676 = vunpack.c.l.b16 %v143
    %v677 = vunpack.c.h.b16 %v143
    %v678 = vunpack.c.l.b16 %v144
    %v679 = vunpack.c.h.b16 %v144
    %v680 = vunpack.c.l.b16 %v145
    %v681 = vunpack.c.h.b16 %v145
    %v682 = vunpack.c.l.b16 %v146
    %v683 = vunpack.c.h.b16 %v146
    %v684 = vunpack.c.l.b16 %v147
    %v685 = vunpack.c.h.b16 %v147
    %v686 = vunpack.c.l.b16 %v148
    %v687 = vunpack.c.h.b16 %v148
    %v688 = vunpack.c.l.b16 %v149
    %v689 = vunpack.c.h.b16 %v149
    %v690 = vunpack.c.l.b16 %v150
    %v691 = vunpack.c.h.b16 %v150
    %v692 = vunpack.c.l.b16 %v151
    %v693 = vunpack.c.h.b16 %v151
    %v694 = vunpack.c.l.b16 %v152
    %v695 = vunpack.c.h.b16 %v152
    %v696 = vunpack.c.l.b16 %v153
    %v697 = vunpack.c.h.b16 %v153
    %v698 = vunpack.c.l.b16 %v154
    %v699 = vunpack.c.h.b16 %v154
    %v700 = vunpack.c.l.b16 %v155
    %v701 = vunpack.c.h.b16 %v155
    %v702 = vunpack.c.l.b16 %v156
    %v703 = vunpack.c.h.b16 %v156
    %v704 = vunpack.c.l.b16 %v157
    %v705 = vunpack.c.h.b16 %v157
    %v706 = vunpack.c.l.b16 %v158
    %v707 = vunpack.c.h.b16 %v158
    %v708 = vunpack.c.l.b16 %v159
    %v709 = vunpack.c.h.b16 %v159
    %v710 = vunpack.c.l.b16 %v160
    %v711 = vunpack.c.h.b16 %v160
    %v712 = vunpack.c.l.b16 %v161
    %v713 = vunpack.c.h.b16 %v161
    %v714 = vunpack.c.l.b16 %v162
    %v715 = vunpack.c.h.b16 %v162
    %v716 = vunpack.c.l.b16 %v163
    %v717 = vunpack.c.h.b16 %v163
    %v718 = vunpack.c.l.b16 %v164
    %v719 = vunpack.c.h.b16 %v164
    %v720 = vunpack.c.l.b16 %v165
    %v721 = vunpack.c.h.b16 %v165
    %v722 = vunpack.c.l.b16 %v166
    %v723 = vunpack.c.h.b16 %v166
    %v724 = vunpack.c.l.b16 %v167
    %v725 = vunpack.c.h.b16 %v167
    %v726 = vunpack.c.l.b16 %v168
    %v727 = vunpack.c.h.b16 %v168
    %v728 = vunpack.c.l.b16 %v169
    %v729 = vunpack.c.h.b16 %v169
    %v730 = vunpack.c.l.b16 %v170
    %v731 = vunpack.c.h.b16 %v170
    %v732 = vunpack.c.l.b16 %v171
    %v733 = vunpack.c.h.b16 %v171
    %v734 = vunpack.c.l.b16 %v172
    %v735 = vunpack.c.h.b16 %v172
    %v736 = vunpack.c.l.b16 %v173
    %v737 = vunpack.c.h.b16 %v173
    %v738 = vunpack.c.l.b16 %v174
    %v739 = vunpack.c.h.b16 %v174
    %v740 = vunpack.c.l.b16 %v175
    %v741 = vunpack.c.h.b16 %v175
    %v742 = vunpack.c.l.b16 %v176
    %v743 = vunpack.c.h.b16 %v176
    %v744 = vunpack.c.l.b16 %v177
    %v745 = vunpack.c.h.b16 %v177
    %v746 = vunpack.c.l.b16 %v178
    %v747 = vunpack.c.h.b16 %v178
    %v748 = vunpack.c.l.b16 %v179
    %v749 = vunpack.c.h.b16 %v179
    %v750 = vunpack.c.l.b16 %v180
    %v751 = vunpack.c.h.b16 %v180
    %v752 = vunpack.c.l.b16 %v181
    %v753 = vunpack.c.h.b16 %v181
    %v754 = vunpack.c.l.b16 %v182
    %v755 = vunpack.c.h.b16 %v182
    %v756 = vunpack.c.l.b16 %v183
    %v757 = vunpack.c.h.b16 %v183
    %v758 = vunpack.c.l.b16 %v184
    %v759 = vunpack.c.h.b16 %v184
    %v760 = vunpack.c.l.b16 %v185
    %v761 = vunpack.c.h.b16 %v185
    %v762 = vunpack.c.l.b16 %v186
    %v763 = vunpack.c.h.b16 %v186
    %v764 = vunpack.c.l.b16 %v187
    %v765 = vunpack.c.h.b16 %v187
    %v766 = vunpack.c.l.b16 %v188
    %v767 = vunpack.c.h.b16 %v188
    %v768 = vunpack.c.l.b16 %v189
    %v769 = vunpack.c.h.b16 %v189
    %v770 = vunpack.c.l.b16 %v190
    %v771 = vunpack.c.h.b16 %v190
    %v772 = vunpack.c.l.b16 %v191
    %v773 = vunpack.c.h.b16 %v191
    %v774 = vunpack.c.l.b16 %v192
    %v775 = vunpack.c.h.b16 %v192
    %v776 = vunpack.c.l.b16 %v193
    %v777 = vunpack.c.h.b16 %v193
    %v778 = vunpack.c.l.b16 %v194
    %v779 = vunpack.c.h.b16 %v194
    %v780 = vunpack.c.l.b16 %v195
    %v781 = vunpack.c.h.b16 %v195
    %v782 = vunpack.c.l.b16 %v196
    %v783 = vunpack.c.h.b16 %v196
    %v784 = vunpack.c.l.b16 %v197
    %v785 = vunpack.c.h.b16 %v197
    %v786 = vunpack.c.l.b16 %v198
    %v787 = vunpack.c.h.b16 %v198
    %v788 = vunpack.c.l.b16 %v199
    %v789 = vunpack.c.h.b16 %v199
    %v790 = vunpack.c.l.b16 %v200
    %v791 = vunpack.c.h.b16 %v200
    %v792 = vunpack.c.l.b16 %v201
    %v793 = vunpack.c.h.b16 %v201
    %v794 = vunpack.c.l.b16 %v202
    %v795 = vunpack.c.h.b16 %v202
    %v796 = vunpack.c.l.b16 %v203
    %v797 = vunpack.c.h.b16 %v203
    %v798 = vunpack.c.l.b16 %v204
    %v799 = vunpack.c.h.b16 %v204
    %v800 = vunpack.c.l.b16 %v205
    %v801 = vunpack.c.h.b16 %v205
    %v802 = vunpack.c.l.b16 %v206
    %v803 = vunpack.c.h.b16 %v206
    %v804 = vunpack.c.l.b16 %v207
    %v805 = vunpack.c.h.b16 %v207
    %v806 = vunpack.c.l.b16 %v208
    %v807 = vunpack.c.h.b16 %v208
    %v808 = vunpack.c.l.b16 %v209
    %v809 = vunpack.c.h.b16 %v209
    %v810 = vunpack.c.l.b16 %v210
    %v811 = vunpack.c.h.b16 %v210
    %v812 = vunpack.c.l.b16 %v211
    %v813 = vunpack.c.h.b16 %v211
    %v814 = vunpack.c.l.b16 %v212
    %v815 = vunpack.c.h.b16 %v212
    %v816 = vunpack.c.l.b16 %v213
    %v817 = vunpack.c.h.b16 %v213
    %v818 = vunpack.c.l.b16 %v214
    %v819 = vunpack.c.h.b16 %v214
    %v820 = vunpack.c.l.b16 %v215
    %v821 = vunpack.c.h.b16 %v215
    %v822 = vunpack.c.l.b16 %v216
    %v823 = vunpack.c.h.b16 %v216
    %v824 = vpack.c.b16 %v444, %v440
    %v825 = vpack.c.b16 %v445, %v441
    %v826 = vpack.c.b16 %v446, %v442
    %v827 = vpack.c.b16 %v447, %v443
    %v828 = vpack.c.b16 %v452, %v448
    %v829 = vpack.c.b16 %v453, %v449
    %v830 = vpack.c.b16 %v454, %v450
    %v831 = vpack.c.b16 %v455, %v451
    %v832 = vpack.c.b16 %v460, %v456
    %v833 = vpack.c.b16 %v461, %v457
    %v834 = vpack.c.b16 %v462, %v458
    %v835 = vpack.c.b16 %v463, %v459
    %v836 = vpack.c.b16 %v468, %v464
    %v837 = vpack.c.b16 %v469, %v465
    %v838 = vpack.c.b16 %v470, %v466
    %v839 = vpack.c.b16 %v471, %v467
    %v840 = vpack.c.b16 %v476, %v472
    %v841 = vpack.c.b16 %v477, %v473
    %v842 = vpack.c.b16 %v478, %v474
    %v843 = vpack.c.b16 %v479, %v475
    %v844 = vpack.c.b16 %v484, %v480
    %v845 = vpack.c.b16 %v485, %v481
    %v846 = vpack.c.b16 %v486, %v482
    %v847 = vpack.c.b16 %v487, %v483
    %v848 = vpack.c.b16 %v492, %v488
    %v849 = vpack.c.b16 %v493, %v489
    %v850 = vpack.c.b16 %v494, %v490
    %v851 = vpack.c.b16 %v495, %v491
    %v852 = vpack.c.b16 %v500, %v496
    %v853 = vpack.c.b16 %v501, %v497
    %v854 = vpack.c.b16 %v502, %v498
    %v855 = vpack.c.b16 %v503, %v499
    %v856 = vpack.c.b16 %v508, %v504
    %v857 = vpack.c.b16 %v509, %v505
    %v858 = vpack.c.b16 %v510, %v506
    %v859 = vpack.c.b16 %v511, %v507
    %v860 = vpack.c.b16 %v516, %v512
    %v861 = vpack.c.b16 %v517, %v513
    %v862 = vpack.c.b16 %v518, %v514
    %v863 = vpack.c.b16 %v519, %v515
    %v864 = vpack.c.b16 %v524, %v520
    %v865 = vpack.c.b16 %v525, %v521
    %v866 = vpack.c.b16 %v526, %v522
    %v867 = vpack.c.b16 %v527, %v523
    %v868 = vpack.c.b16 %v532, %v528
    %v869 = vpack.c.b16 %v533, %v529
    %v870 = vpack.c.b16 %v534, %v530
    %v871 = vpack.c.b16 %v535, %v531
    %v872 = vpack.c.b16 %v540, %v536
    %v873 = vpack.c.b16 %v541, %v537
    %v874 = vpack.c.b16 %v542, %v538
    %v875 = vpack.c.b16 %v543, %v539
    %v876 = vpack.c.b16 %v548, %v544
    %v877 = vpack.c.b16 %v549, %v545
    %v878 = vpack.c.b16 %v550, %v546
    %v879 = vpack.c.b16 %v551, %v547
    %v880 = vpack.c.b16 %v556, %v552
    %v881 = vpack.c.b16 %v557, %v553
    %v882 = vpack.c.b16 %v558, %v554
    %v883 = vpack.c.b16 %v559, %v555
    %v884 = vpack.c.b16 %v564, %v560
    %v885 = vpack.c.b16 %v565, %v561
    %v886 = vpack.c.b16 %v566, %v562
    %v887 = vpack.c.b16 %v567, %v563
    %v888 = vpack.c.b16 %v572, %v568
    %v889 = vpack.c.b16 %v573, %v569
    %v890 = vpack.c.b16 %v574, %v570
    %v891 = vpack.c.b16 %v575, %v571
    %v892 = vpack.c.b16 %v580, %v576
    %v893 = vpack.c.b16 %v581, %v577
    %v894 = vpack.c.b16 %v582, %v578
    %v895 = vpack.c.b16 %v583, %v579
    %v896 = vpack.c.b16 %v588, %v584
    %v897 = vpack.c.b16 %v589, %v585
    %v898 = vpack.c.b16 %v590, %v586
    %v899 = vpack.c.b16 %v591, %v587
    %v900 = vpack.c.b16 %v596, %v592
    %v901 = vpack.c.b16 %v597, %v593
    %v902 = vpack.c.b16 %v598, %v594
    %v903 = vpack.c.b16 %v599, %v595
    %v904 = vpack.c.b16 %v604, %v600
    %v905 = vpack.c.b16 %v605, %v601
    %v906 = vpack.c.b16 %v606, %v602
    %v907 = vpack.c.b16 %v607, %v603
    %v908 = vpack.c.b16 %v612, %v608
    %v909 = vpack.c.b16 %v613, %v609
    %v910 = vpack.c.b16 %v614, %v610
    %v911 = vpack.c.b16 %v615, %v611
    %v912 = vpack.c.b16 %v620, %v616
    %v913 = vpack.c.b16 %v621, %v617
    %v914 = vpack.c.b16 %v622, %v618
    %v915 = vpack.c.b16 %v623, %v619
    %v916 = vpack.c.b16 %v628, %v624
    %v917 = vpack.c.b16 %v629, %v625
    %v918 = vpack.c.b16 %v630, %v626
    %v919 = vpack.c.b16 %v631, %v627
    %v920 = vpack.c.b16 %v636, %v632
    %v921 = vpack.c.b16 %v637, %v633
    %v922 = vpack.c.b16 %v638, %v634
    %v923 = vpack.c.b16 %v639, %v635
    %v924 = vpack.c.b16 %v644, %v640
    %v925 = vpack.c.b16 %v645, %v641
    %v926 = vpack.c.b16 %v646, %v642
    %v927 = vpack.c.b16 %v647, %v643
    %v928 = vpack.c.b16 %v652, %v648
    %v929 = vpack.c.b16 %v653, %v649
    %v930 = vpack.c.b16 %v654, %v650
    %v931 = vpack.c.b16 %v655, %v651
    %v932 = vpack.c.b16 %v660, %v656
    %v933 = vpack.c.b16 %v661, %v657
    %v934 = vpack.c.b16 %v662, %v658
    %v935 = vpack.c.b16 %v663, %v659
    %v936 = vpack.c.b16 %v668, %v664
    %v937 = vpack.c.b16 %v669, %v665
    %v938 = vpack.c.b16 %v670, %v666
    %v939 = vpack.c.b16 %v671, %v667
    %v940 = vpack.c.b16 %v676, %v672
    %v941 = vpack.c.b16 %v677, %v673
    %v942 = vpack.c.b16 %v678, %v674
    %v943 = vpack.c.b16 %v679, %v675
    %v944 = vpack.c.b16 %v684, %v680
    %v945 = vpack.c.b16 %v685, %v681
    %v946 = vpack.c.b16 %v686, %v682
    %v947 = vpack.c.b16 %v687, %v683
    %v948 = vpack.c.b16 %v692, %v688
    %v949 = vpack.c.b16 %v693, %v689
    %v950 = vpack.c.b16 %v694, %v690
    %v951 = vpack.c.b16 %v695, %v691
    %v952 = vpack.c.b16 %v700, %v696
    %v953 = vpack.c.b16 %v701, %v697
    %v954 = vpack.c.b16 %v702, %v698
    %v955 = vpack.c.b16 %v703, %v699
    %v956 = vpack.c.b16 %v708, %v704
    %v957 = vpack.c.b16 %v709, %v705
    %v958 = vpack.c.b16 %v710, %v706
    %v959 = vpack.c.b16 %v711, %v707
    %v960 = vpack.c.b16 %v716, %v712
    %v961 = vpack.c.b16 %v717, %v713
    %v962 = vpack.c.b16 %v718, %v714
    %v963 = vpack.c.b16 %v719, %v715
    %v964 = vpack.c.b16 %v724, %v720
    %v965 = vpack.c.b16 %v725, %v721
    %v966 = vpack.c.b16 %v726, %v722
    %v967 = vpack.c.b16 %v727, %v723
    %v968 = vpack.c.b16 %v732, %v728
    %v969 = vpack.c.b16 %v733, %v729
    %v970 = vpack.c.b16 %v734, %v730
    %v971 = vpack.c.b16 %v735, %v731
    %v972 = vpack.c.b16 %v740, %v736
    %v973 = vpack.c.b16 %v741, %v737
    %v974 = vpack.c.b16 %v742, %v738
    %v975 = vpack.c.b16 %v743, %v739
    %v976 = vpack.c.b16 %v748, %v744
    %v977 = vpack.c.b16 %v749, %v745
    %v978 = vpack.c.b16 %v750, %v746
    %v979 = vpack.c.b16 %v751, %v747
    %v980 = vpack.c.b16 %v756, %v752
    %v981 = vpack.c.b16 %v757, %v753
    %v982 = vpack.c.b16 %v758, %v754
    %v983 = vpack.c.b16 %v759, %v755
    %v984 = vpack.c.b16 %v764, %v760
    %v985 = vpack.c.b16 %v765, %v761
    %v986 = vpack.c.b16 %v766, %v762
    %v987 = vpack.c.b16 %v767, %v763
    %v988 = vpack.c.b16 %v772, %v768
    %v989 = vpack.c.b16 %v773, %v769
    %v990 = vpack.c.b16 %v774, %v770
    %v991 = vpack.c.b16 %v775, %v771
    %v992 = vpack.c.b16 %v780, %v776
    %v993 = vpack.c.b16 %v781, %v777
    %v994 = vpack.c.b16 %v782, %v778
    %v995 = vpack.c.b16 %v783, %v779
    %v996 = vpack.c.b16 %v788, %v784
    %v997 = vpack.c.b16 %v789, %v785
    %v998 = vpack.c.b16 %v790, %v786
    %v999 = vpack.c.b16 %v791, %v787
    %v1000 = vpack.c.b16 %v796, %v792
    %v1001 = vpack.c.b16 %v797, %v793
    %v1002 = vpack.c.b16 %v798, %v794
    %v1003 = vpack.c.b16 %v799, %v795
    %v1004 = vpack.c.b16 %v804, %v800
    %v1005 = vpack.c.b16 %v805, %v801
    %v1006 = vpack.c.b16 %v806, %v802
    %v1007 = vpack.c.b16 %v807, %v803
    %v1008 = vpack.c.b16 %v812, %v808
    %v1009 = vpack.c.b16 %v813, %v809
    %v1010 = vpack.c.b16 %v814, %v810
    %v1011 = vpack.c.b16 %v815, %v811
    %v1012 = vpack.c.b16 %v820, %v816
    %v1013 = vpack.c.b16 %v821, %v817
    %v1014 = vpack.c.b16 %v822, %v818
    %v1015 = vpack.c.b16 %v823, %v819
    %1208 = vmatpush.bf16.msra.mxu0 %v852
    %1209 = vmatpush.bf16.msra.mxu0 %v848
    %1210 = vmatpush.bf16.msra.mxu0 %v844
    %1211 = vmatpush.bf16.msra.mxu0 %v840
    %1212 = vmatpush.bf16.msra.mxu0 %v836
    %1213 = vmatpush.bf16.msra.mxu0 %v832
    %1214 = vmatpush.bf16.msra.mxu0 %v828
    %1215 = vmatpush.bf16.msra.mxu0 %v824
    %1216 = vmatmul.bf16.gmra.mxu0 %v236
    %v1217 = vpop.f32.mrf.mxu0
    %v1218 = vadd.f32 %v219, %v1217
    %v1219 = vpop.f32.mrf.mxu0
    %1220 = vdwg.mxu0
    %1221 = vmatpush.bf16.msra.mxu0 %v884
    %1222 = vmatpush.bf16.msra.mxu0 %v880
    %1223 = vmatpush.bf16.msra.mxu0 %v876
    %1224 = vmatpush.bf16.msra.mxu0 %v872
    %1225 = vmatpush.bf16.msra.mxu0 %v868
    %1226 = vmatpush.bf16.msra.mxu0 %v864
    %1227 = vmatpush.bf16.msra.mxu0 %v860
    %1228 = vmatpush.bf16.msra.mxu0 %v856
    %1229 = vmatmul.bf16.gmra.mxu0 %v237
    %v1230 = vpop.f32.mrf.mxu0
    %v1231 = vadd.f32 %v1218, %v1230
    %v1232 = vpop.f32.mrf.mxu0
    %1233 = vdwg.mxu0
    %1234 = vmatpush.bf16.msra.mxu0 %v916
    %1235 = vmatpush.bf16.msra.mxu0 %v912
    %1236 = vmatpush.bf16.msra.mxu0 %v908
    %1237 = vmatpush.bf16.msra.mxu0 %v904
    %1238 = vmatpush.bf16.msra.mxu0 %v900
    %1239 = vmatpush.bf16.msra.mxu0 %v896
    %1240 = vmatpush.bf16.msra.mxu0 %v892
    %1241 = vmatpush.bf16.msra.mxu0 %v888
    %1242 = vmatmul.bf16.gmra.mxu0 %v238
    %v1243 = vpop.f32.mrf.mxu0
    %v1244 = vadd.f32 %v1231, %v1243
    %v1245 = vpop.f32.mrf.mxu0
    %1246 = vdwg.mxu0
    %1247 = vmatpush.bf16.msra.mxu0 %v948
    %1248 = vmatpush.bf16.msra.mxu0 %v944
    %1249 = vmatpush.bf16.msra.mxu0 %v940
    %1250 = vmatpush.bf16.msra.mxu0 %v936
    %1251 = vmatpush.bf16.msra.mxu0 %v932
    %1252 = vmatpush.bf16.msra.mxu0 %v928
    %1253 = vmatpush.bf16.msra.mxu0 %v924
    %1254 = vmatpush.bf16.msra.mxu0 %v920
    %1255 = vmatmul.bf16.gmra.mxu0 %v239
    %v1256 = vpop.f32.mrf.mxu0
    %v1257 = vadd.f32 %v1244, %v1256
    %v1258 = vpop.f32.mrf.mxu0
    %1259 = vdwg.mxu0
    %1260 = vmatpush.bf16.msra.mxu0 %v980
    %1261 = vmatpush.bf16.msra.mxu0 %v976
    %1262 = vmatpush.bf16.msra.mxu0 %v972
    %1263 = vmatpush.bf16.msra.mxu0 %v968
    %1264 = vmatpush.bf16.msra.mxu0 %v964
    %1265 = vmatpush.bf16.msra.mxu0 %v960
    %1266 = vmatpush.bf16.msra.mxu0 %v956
    %1267 = vmatpush.bf16.msra.mxu0 %v952
    %1268 = vmatmul.bf16.gmra.mxu0 %v240
    %v1269 = vpop.f32.mrf.mxu0
    %v1270 = vadd.f32 %v1257, %v1269
    %v1271 = vpop.f32.mrf.mxu0
    %1272 = vdwg.mxu0
    %1273 = vmatpush.bf16.msra.mxu0 %v1012
    %1274 = vmatpush.bf16.msra.mxu0 %v1008
    %1275 = vmatpush.bf16.msra.mxu0 %v1004
    %1276 = vmatpush.bf16.msra.mxu0 %v1000
    %1277 = vmatpush.bf16.msra.mxu0 %v996
    %1278 = vmatpush.bf16.msra.mxu0 %v992
    %1279 = vmatpush.bf16.msra.mxu0 %v988
    %1280 = vmatpush.bf16.msra.mxu0 %v984
    %1281 = vmatmul.bf16.gmra.mxu0 %v241
    %v1282 = vpop.f32.mrf.mxu0
    %v1283 = vadd.f32 %v1270, %v1282
    %v1284 = vpop.f32.mrf.mxu0
    %1285 = vdwg.mxu0
    %1286 = vmatpush.bf16.msra.mxu0 %v853
    %1287 = vmatpush.bf16.msra.mxu0 %v849
    %1288 = vmatpush.bf16.msra.mxu0 %v845
    %1289 = vmatpush.bf16.msra.mxu0 %v841
    %1290 = vmatpush.bf16.msra.mxu0 %v837
    %1291 = vmatpush.bf16.msra.mxu0 %v833
    %1292 = vmatpush.bf16.msra.mxu0 %v829
    %1293 = vmatpush.bf16.msra.mxu0 %v825
    %1294 = vmatmul.bf16.gmra.mxu0 %v236
    %v1295 = vpop.f32.mrf.mxu0
    %v1296 = vadd.f32 %v220, %v1295
    %v1297 = vpop.f32.mrf.mxu0
    %1298 = vdwg.mxu0
    %1299 = vmatpush.bf16.msra.mxu0 %v885
    %1300 = vmatpush.bf16.msra.mxu0 %v881
    %1301 = vmatpush.bf16.msra.mxu0 %v877
    %1302 = vmatpush.bf16.msra.mxu0 %v873
    %1303 = vmatpush.bf16.msra.mxu0 %v869
    %1304 = vmatpush.bf16.msra.mxu0 %v865
    %1305 = vmatpush.bf16.msra.mxu0 %v861
    %1306 = vmatpush.bf16.msra.mxu0 %v857
    %1307 = vmatmul.bf16.gmra.mxu0 %v237
    %v1308 = vpop.f32.mrf.mxu0
    %v1309 = vadd.f32 %v1296, %v1308
    %v1310 = vpop.f32.mrf.mxu0
    %1311 = vdwg.mxu0
    %1312 = vmatpush.bf16.msra.mxu0 %v917
    %1313 = vmatpush.bf16.msra.mxu0 %v913
    %1314 = vmatpush.bf16.msra.mxu0 %v909
    %1315 = vmatpush.bf16.msra.mxu0 %v905
    %1316 = vmatpush.bf16.msra.mxu0 %v901
    %1317 = vmatpush.bf16.msra.mxu0 %v897
    %1318 = vmatpush.bf16.msra.mxu0 %v893
    %1319 = vmatpush.bf16.msra.mxu0 %v889
    %1320 = vmatmul.bf16.gmra.mxu0 %v238
    %v1321 = vpop.f32.mrf.mxu0
    %v1322 = vadd.f32 %v1309, %v1321
    %v1323 = vpop.f32.mrf.mxu0
    %1324 = vdwg.mxu0
    %1325 = vmatpush.bf16.msra.mxu0 %v949
    %1326 = vmatpush.bf16.msra.mxu0 %v945
    %1327 = vmatpush.bf16.msra.mxu0 %v941
    %1328 = vmatpush.bf16.msra.mxu0 %v937
    %1329 = vmatpush.bf16.msra.mxu0 %v933
    %1330 = vmatpush.bf16.msra.mxu0 %v929
    %1331 = vmatpush.bf16.msra.mxu0 %v925
    %1332 = vmatpush.bf16.msra.mxu0 %v921
    %1333 = vmatmul.bf16.gmra.mxu0 %v239
    %v1334 = vpop.f32.mrf.mxu0
    %v1335 = vadd.f32 %v1322, %v1334
    %v1336 = vpop.f32.mrf.mxu0
    %1337 = vdwg.mxu0
    %1338 = vmatpush.bf16.msra.mxu0 %v981
    %1339 = vmatpush.bf16.msra.mxu0 %v977
    %1340 = vmatpush.bf16.msra.mxu0 %v973
    %1341 = vmatpush.bf16.msra.mxu0 %v969
    %1342 = vmatpush.bf16.msra.mxu0 %v965
    %1343 = vmatpush.bf16.msra.mxu0 %v961
    %1344 = vmatpush.bf16.msra.mxu0 %v957
    %1345 = vmatpush.bf16.msra.mxu0 %v953
    %1346 = vmatmul.bf16.gmra.mxu0 %v240
    %v1347 = vpop.f32.mrf.mxu0
    %v1348 = vadd.f32 %v1335, %v1347
    %v1349 = vpop.f32.mrf.mxu0
    %1350 = vdwg.mxu0
    %1351 = vmatpush.bf16.msra.mxu0 %v1013
    %1352 = vmatpush.bf16.msra.mxu0 %v1009
    %1353 = vmatpush.bf16.msra.mxu0 %v1005
    %1354 = vmatpush.bf16.msra.mxu0 %v1001
    %1355 = vmatpush.bf16.msra.mxu0 %v997
    %1356 = vmatpush.bf16.msra.mxu0 %v993
    %1357 = vmatpush.bf16.msra.mxu0 %v989
    %1358 = vmatpush.bf16.msra.mxu0 %v985
    %1359 = vmatmul.bf16.gmra.mxu0 %v241
    %v1360 = vpop.f32.mrf.mxu0
    %v1361 = vadd.f32 %v1348, %v1360
    %v1362 = vpop.f32.mrf.mxu0
    %1363 = vdwg.mxu0
    %1364 = vmatpush.bf16.msra.mxu0 %v854
    %1365 = vmatpush.bf16.msra.mxu0 %v850
    %1366 = vmatpush.bf16.msra.mxu0 %v846
    %1367 = vmatpush.bf16.msra.mxu0 %v842
    %1368 = vmatpush.bf16.msra.mxu0 %v838
    %1369 = vmatpush.bf16.msra.mxu0 %v834
    %1370 = vmatpush.bf16.msra.mxu0 %v830
    %1371 = vmatpush.bf16.msra.mxu0 %v826
    %1372 = vmatmul.bf16.gmra.mxu0 %v236
    %v1373 = vpop.f32.mrf.mxu0
    %v1374 = vadd.f32 %v221, %v1373
    %v1375 = vpop.f32.mrf.mxu0
    %1376 = vdwg.mxu0
    %1377 = vmatpush.bf16.msra.mxu0 %v886
    %1378 = vmatpush.bf16.msra.mxu0 %v882
    %1379 = vmatpush.bf16.msra.mxu0 %v878
    %1380 = vmatpush.bf16.msra.mxu0 %v874
    %1381 = vmatpush.bf16.msra.mxu0 %v870
    %1382 = vmatpush.bf16.msra.mxu0 %v866
    %1383 = vmatpush.bf16.msra.mxu0 %v862
    %1384 = vmatpush.bf16.msra.mxu0 %v858
    %1385 = vmatmul.bf16.gmra.mxu0 %v237
    %v1386 = vpop.f32.mrf.mxu0
    %v1387 = vadd.f32 %v1374, %v1386
    %v1388 = vpop.f32.mrf.mxu0
    %1389 = vdwg.mxu0
    %1390 = vmatpush.bf16.msra.mxu0 %v918
    %1391 = vmatpush.bf16.msra.mxu0 %v914
    %1392 = vmatpush.bf16.msra.mxu0 %v910
    %1393 = vmatpush.bf16.msra.mxu0 %v906
    %1394 = vmatpush.bf16.msra.mxu0 %v902
    %1395 = vmatpush.bf16.msra.mxu0 %v898
    %1396 = vmatpush.bf16.msra.mxu0 %v894
    %1397 = vmatpush.bf16.msra.mxu0 %v890
    %1398 = vmatmul.bf16.gmra.mxu0 %v238
    %v1399 = vpop.f32.mrf.mxu0
    %v1400 = vadd.f32 %v1387, %v1399
    %v1401 = vpop.f32.mrf.mxu0
    %1402 = vdwg.mxu0
    %1403 = vmatpush.bf16.msra.mxu0 %v950
    %1404 = vmatpush.bf16.msra.mxu0 %v946
    %1405 = vmatpush.bf16.msra.mxu0 %v942
    %1406 = vmatpush.bf16.msra.mxu0 %v938
    %1407 = vmatpush.bf16.msra.mxu0 %v934
    %1408 = vmatpush.bf16.msra.mxu0 %v930
    %1409 = vmatpush.bf16.msra.mxu0 %v926
    %1410 = vmatpush.bf16.msra.mxu0 %v922
    %1411 = vmatmul.bf16.gmra.mxu0 %v239
    %v1412 = vpop.f32.mrf.mxu0
    %v1413 = vadd.f32 %v1400, %v1412
    %v1414 = vpop.f32.mrf.mxu0
    %1415 = vdwg.mxu0
    %1416 = vmatpush.bf16.msra.mxu0 %v982
    %1417 = vmatpush.bf16.msra.mxu0 %v978
    %1418 = vmatpush.bf16.msra.mxu0 %v974
    %1419 = vmatpush.bf16.msra.mxu0 %v970
    %1420 = vmatpush.bf16.msra.mxu0 %v966
    %1421 = vmatpush.bf16.msra.mxu0 %v962
    %1422 = vmatpush.bf16.msra.mxu0 %v958
    %1423 = vmatpush.bf16.msra.mxu0 %v954
    %1424 = vmatmul.bf16.gmra.mxu0 %v240
    %v1425 = vpop.f32.mrf.mxu0
    %v1426 = vadd.f32 %v1413, %v1425
    %v1427 = vpop.f32.mrf.mxu0
    %1428 = vdwg.mxu0
    %1429 = vmatpush.bf16.msra.mxu0 %v1014
    %1430 = vmatpush.bf16.msra.mxu0 %v1010
    %1431 = vmatpush.bf16.msra.mxu0 %v1006
    %1432 = vmatpush.bf16.msra.mxu0 %v1002
    %1433 = vmatpush.bf16.msra.mxu0 %v998
    %1434 = vmatpush.bf16.msra.mxu0 %v994
    %1435 = vmatpush.bf16.msra.mxu0 %v990
    %1436 = vmatpush.bf16.msra.mxu0 %v986
    %1437 = vmatmul.bf16.gmra.mxu0 %v241
    %v1438 = vpop.f32.mrf.mxu0
    %v1439 = vadd.f32 %v1426, %v1438
    %v1440 = vpop.f32.mrf.mxu0
    %1441 = vdwg.mxu0
    %1442 = vmatpush.bf16.msra.mxu0 %v855
    %1443 = vmatpush.bf16.msra.mxu0 %v851
    %1444 = vmatpush.bf16.msra.mxu0 %v847
    %1445 = vmatpush.bf16.msra.mxu0 %v843
    %1446 = vmatpush.bf16.msra.mxu0 %v839
    %1447 = vmatpush.bf16.msra.mxu0 %v835
    %1448 = vmatpush.bf16.msra.mxu0 %v831
    %1449 = vmatpush.bf16.msra.mxu0 %v827
    %1450 = vmatmul.bf16.gmra.mxu0 %v236
    %v1451 = vpop.f32.mrf.mxu0
    %v1452 = vadd.f32 %v222, %v1451
    %v1453 = vpop.f32.mrf.mxu0
    %1454 = vdwg.mxu0
    %1455 = vmatpush.bf16.msra.mxu0 %v887
    %1456 = vmatpush.bf16.msra.mxu0 %v883
    %1457 = vmatpush.bf16.msra.mxu0 %v879
    %1458 = vmatpush.bf16.msra.mxu0 %v875
    %1459 = vmatpush.bf16.msra.mxu0 %v871
    %1460 = vmatpush.bf16.msra.mxu0 %v867
    %1461 = vmatpush.bf16.msra.mxu0 %v863
    %1462 = vmatpush.bf16.msra.mxu0 %v859
    %1463 = vmatmul.bf16.gmra.mxu0 %v237
    %v1464 = vpop.f32.mrf.mxu0
    %v1465 = vadd.f32 %v1452, %v1464
    %v1466 = vpop.f32.mrf.mxu0
    %1467 = vdwg.mxu0
    %1468 = vmatpush.bf16.msra.mxu0 %v919
    %1469 = vmatpush.bf16.msra.mxu0 %v915
    %1470 = vmatpush.bf16.msra.mxu0 %v911
    %1471 = vmatpush.bf16.msra.mxu0 %v907
    %1472 = vmatpush.bf16.msra.mxu0 %v903
    %1473 = vmatpush.bf16.msra.mxu0 %v899
    %1474 = vmatpush.bf16.msra.mxu0 %v895
    %1475 = vmatpush.bf16.msra.mxu0 %v891
    %1476 = vmatmul.bf16.gmra.mxu0 %v238
    %v1477 = vpop.f32.mrf.mxu0
    %v1478 = vadd.f32 %v1465, %v1477
    %v1479 = vpop.f32.mrf.mxu0
    %1480 = vdwg.mxu0
    %1481 = vmatpush.bf16.msra.mxu0 %v951
    %1482 = vmatpush.bf16.msra.mxu0 %v947
    %1483 = vmatpush.bf16.msra.mxu0 %v943
    %1484 = vmatpush.bf16.msra.mxu0 %v939
    %1485 = vmatpush.bf16.msra.mxu0 %v935
    %1486 = vmatpush.bf16.msra.mxu0 %v931
    %1487 = vmatpush.bf16.msra.mxu0 %v927
    %1488 = vmatpush.bf16.msra.mxu0 %v923
    %1489 = vmatmul.bf16.gmra.mxu0 %v239
    %v1490 = vpop.f32.mrf.mxu0
    %v1491 = vadd.f32 %v1478, %v1490
    %v1492 = vpop.f32.mrf.mxu0
    %1493 = vdwg.mxu0
    %1494 = vmatpush.bf16.msra.mxu0 %v983
    %1495 = vmatpush.bf16.msra.mxu0 %v979
    %1496 = vmatpush.bf16.msra.mxu0 %v975
    %1497 = vmatpush.bf16.msra.mxu0 %v971
    %1498 = vmatpush.bf16.msra.mxu0 %v967
    %1499 = vmatpush.bf16.msra.mxu0 %v963
    %1500 = vmatpush.bf16.msra.mxu0 %v959
    %1501 = vmatpush.bf16.msra.mxu0 %v955
    %1502 = vmatmul.bf16.gmra.mxu0 %v240
    %v1503 = vpop.f32.mrf.mxu0
    %v1504 = vadd.f32 %v1491, %v1503
    %v1505 = vpop.f32.mrf.mxu0
    %1506 = vdwg.mxu0
    %1507 = vmatpush.bf16.msra.mxu0 %v1015
    %1508 = vmatpush.bf16.msra.mxu0 %v1011
    %1509 = vmatpush.bf16.msra.mxu0 %v1007
    %1510 = vmatpush.bf16.msra.mxu0 %v1003
    %1511 = vmatpush.bf16.msra.mxu0 %v999
    %1512 = vmatpush.bf16.msra.mxu0 %v995
    %1513 = vmatpush.bf16.msra.mxu0 %v991
    %1514 = vmatpush.bf16.msra.mxu0 %v987
    %1515 = vmatmul.bf16.gmra.mxu0 %v241
    %v1516 = vpop.f32.mrf.mxu0
    %v1517 = vadd.f32 %v1504, %v1516
    %v1518 = vpop.f32.mrf.mxu0
    %1519 = vdwg.mxu0
    %v1520 = vmax.f32 %v1283, 0.0
    %v1521 = vmax.f32 %v1361, 0.0
    %v1522 = vmax.f32 %v1439, 0.0
    %v1523 = vmax.f32 %v1517, 0.0
    %v1524 = vpack.c.bf16 %v1520, %v1520
    %v1525 = vpack.c.bf16 %v1521, %v1521
    %v1526 = vpack.c.bf16 %v1522, %v1522
    %v1527 = vpack.c.bf16 %v1523, %v1523
    %v1528 = vld [vmem:[%s3] sm:$0xf]
    %v1529 = vld [vmem:[%s3 + $0x4] sm:$0xf]
    %v1530 = vld [vmem:[%s3 + $0x8] sm:$0xf]
    %v1531 = vld [vmem:[%s3 + $0xc] sm:$0xf]
    %v1532 = vld [vmem:[%s3 + $0x10] sm:$0xf]
    %v1533 = vld [vmem:[%s3 + $0x14] sm:$0xf]
    %v1534 = vld [vmem:[%s3 + $0x18] sm:$0xf]
    %v1535 = vld [vmem:[%s3 + $0x1c] sm:$0xf]
    %v1536 = vld [vmem:[%s3 + $0x20] sm:$0xf]
    %v1537 = vld [vmem:[%s3 + $0x24] sm:$0xf]
    %v1538 = vld [vmem:[%s3 + $0x28] sm:$0xf]
    %v1539 = vld [vmem:[%s3 + $0x2c] sm:$0xf]
    %v1540 = vld [vmem:[%s3 + $0x30] sm:$0xf]
    %v1541 = vld [vmem:[%s3 + $0x34] sm:$0xf]
    %v1542 = vld [vmem:[%s3 + $0x38] sm:$0xf]
    %v1543 = vld [vmem:[%s3 + $0x3c] sm:$0xf]
    %v1544 = vld [vmem:[%s3 + $0x40] sm:$0xf]
    %v1545 = vld [vmem:[%s3 + $0x44] sm:$0xf]
    %v1546 = vld [vmem:[%s3 + $0x48] sm:$0xf]
    %v1547 = vld [vmem:[%s3 + $0x4c] sm:$0xf]
    %v1548 = vld [vmem:[%s3 + $0x50] sm:$0xf]
    %v1549 = vld [vmem:[%s3 + $0x54] sm:$0xf]
    %v1550 = vld [vmem:[%s3 + $0x58] sm:$0xf]
    %v1551 = vld [vmem:[%s3 + $0x5c] sm:$0xf]
    %v1552 = vld [vmem:[%s3 + $0x60] sm:$0xf]
    %v1553 = vld [vmem:[%s3 + $0x64] sm:$0xf]
    %v1554 = vld [vmem:[%s3 + $0x68] sm:$0xf]
    %v1555 = vld [vmem:[%s3 + $0x6c] sm:$0xf]
    %v1556 = vld [vmem:[%s3 + $0x70] sm:$0xf]
    %v1557 = vld [vmem:[%s3 + $0x74] sm:$0xf]
    %v1558 = vld [vmem:[%s3 + $0x78] sm:$0xf]
    %v1559 = vld [vmem:[%s3 + $0x7c] sm:$0xf]
    %v1560 = vld [vmem:[%s3 + $0x80] sm:$0xf]
    %v1561 = vld [vmem:[%s3 + $0x84] sm:$0xf]
    %v1562 = vld [vmem:[%s3 + $0x88] sm:$0xf]
    %v1563 = vld [vmem:[%s3 + $0x8c] sm:$0xf]
    %v1564 = vld [vmem:[%s3 + $0x90] sm:$0xf]
    %v1565 = vld [vmem:[%s3 + $0x94] sm:$0xf]
    %v1566 = vld [vmem:[%s3 + $0x98] sm:$0xf]
    %v1567 = vld [vmem:[%s3 + $0x9c] sm:$0xf]
    %v1568 = vld [vmem:[%s3 + $0xa0] sm:$0xf]
    %v1569 = vld [vmem:[%s3 + $0xa4] sm:$0xf]
    %v1570 = vld [vmem:[%s3 + $0xa8] sm:$0xf]
    %v1571 = vld [vmem:[%s3 + $0xac] sm:$0xf]
    %v1572 = vld [vmem:[%s3 + $0xb0] sm:$0xf]
    %v1573 = vld [vmem:[%s3 + $0xb4] sm:$0xf]
    %v1574 = vld [vmem:[%s3 + $0xb8] sm:$0xf]
    %v1575 = vld [vmem:[%s3 + $0xbc] sm:$0xf]
    %v1576 = vld [vmem:[%s3 + $0xc0] sm:$0xf]
    %v1577 = vld [vmem:[%s3 + $0xc4] sm:$0xf]
    %v1578 = vld [vmem:[%s4] sm:$0x1]
    %v1580 = vperm.slane %v1578, 0
    %v1632 = vunpack.c.l.b16 %v1528
    %v1633 = vunpack.c.l.b16 %v1529
    %v1634 = vunpack.c.l.b16 %v1530
    %v1635 = vunpack.c.l.b16 %v1531
    %v1636 = vunpack.c.l.b16 %v1532
    %v1637 = vunpack.c.l.b16 %v1533
    %v1638 = vunpack.c.l.b16 %v1534
    %v1639 = vunpack.c.l.b16 %v1535
    %v1640 = vunpack.c.l.b16 %v1536
    %v1641 = vunpack.c.l.b16 %v1537
    %v1642 = vunpack.c.l.b16 %v1538
    %v1643 = vunpack.c.l.b16 %v1539
    %v1644 = vunpack.c.l.b16 %v1540
    %v1645 = vunpack.c.l.b16 %v1541
    %v1646 = vunpack.c.l.b16 %v1542
    %v1647 = vunpack.c.l.b16 %v1543
    %v1648 = vunpack.c.l.b16 %v1544
    %v1649 = vunpack.c.l.b16 %v1545
    %v1650 = vunpack.c.l.b16 %v1546
    %v1651 = vunpack.c.l.b16 %v1547
    %v1652 = vunpack.c.l.b16 %v1548
    %v1653 = vunpack.c.l.b16 %v1549
    %v1654 = vunpack.c.l.b16 %v1550
    %v1655 = vunpack.c.l.b16 %v1551
    %v1656 = vunpack.c.l.b16 %v1552
    %v1657 = vunpack.c.l.b16 %v1553
    %v1658 = vunpack.c.l.b16 %v1554
    %v1659 = vunpack.c.l.b16 %v1555
    %v1660 = vunpack.c.l.b16 %v1556
    %v1661 = vunpack.c.l.b16 %v1557
    %v1662 = vunpack.c.l.b16 %v1558
    %v1663 = vunpack.c.l.b16 %v1559
    %v1664 = vunpack.c.l.b16 %v1560
    %v1665 = vunpack.c.l.b16 %v1561
    %v1666 = vunpack.c.l.b16 %v1562
    %v1667 = vunpack.c.l.b16 %v1563
    %v1668 = vunpack.c.l.b16 %v1564
    %v1669 = vunpack.c.l.b16 %v1565
    %v1670 = vunpack.c.l.b16 %v1566
    %v1671 = vunpack.c.l.b16 %v1567
    %v1672 = vunpack.c.l.b16 %v1568
    %v1673 = vunpack.c.l.b16 %v1569
    %v1674 = vunpack.c.l.b16 %v1570
    %v1675 = vunpack.c.l.b16 %v1571
    %v1676 = vunpack.c.l.b16 %v1572
    %v1677 = vunpack.c.l.b16 %v1573
    %v1678 = vunpack.c.l.b16 %v1574
    %v1679 = vunpack.c.l.b16 %v1575
    %v1680 = vunpack.c.l.b16 %v1576
    %v1681 = vunpack.c.l.b16 %v1577
    %v1682 = vpack.c.b16 %v1633, %v1632
    %v1683 = vpack.c.b16 %v1635, %v1634
    %v1684 = vpack.c.b16 %v1637, %v1636
    %v1685 = vpack.c.b16 %v1639, %v1638
    %v1686 = vpack.c.b16 %v1641, %v1640
    %v1687 = vpack.c.b16 %v1643, %v1642
    %v1688 = vpack.c.b16 %v1645, %v1644
    %v1689 = vpack.c.b16 %v1647, %v1646
    %v1690 = vpack.c.b16 %v1649, %v1648
    %v1691 = vpack.c.b16 %v1651, %v1650
    %v1692 = vpack.c.b16 %v1653, %v1652
    %v1693 = vpack.c.b16 %v1655, %v1654
    %v1694 = vpack.c.b16 %v1657, %v1656
    %v1695 = vpack.c.b16 %v1659, %v1658
    %v1696 = vpack.c.b16 %v1661, %v1660
    %v1697 = vpack.c.b16 %v1663, %v1662
    %v1698 = vpack.c.b16 %v1665, %v1664
    %v1699 = vpack.c.b16 %v1667, %v1666
    %v1700 = vpack.c.b16 %v1669, %v1668
    %v1701 = vpack.c.b16 %v1671, %v1670
    %v1702 = vpack.c.b16 %v1673, %v1672
    %v1703 = vpack.c.b16 %v1675, %v1674
    %v1704 = vpack.c.b16 %v1677, %v1676
    %v1705 = vpack.c.b16 %v1679, %v1678
    %v1706 = vpack.c.b16 %v1681, %v1680
    %vm1732 = vcmask 130048
    %v1734 = vsel %vm1732, %v1527, 0
    %1736 = vmatpush.bf16.msra.mxu0 %v1689
    %1737 = vmatpush.bf16.msra.mxu0 %v1688
    %1738 = vmatpush.bf16.msra.mxu0 %v1687
    %1739 = vmatpush.bf16.msra.mxu0 %v1686
    %1740 = vmatpush.bf16.msra.mxu0 %v1685
    %1741 = vmatpush.bf16.msra.mxu0 %v1684
    %1742 = vmatpush.bf16.msra.mxu0 %v1683
    %1743 = vmatpush.bf16.msra.mxu0 %v1682
    %1744 = vmatmul.bf16.gmra.mxu0 %v1524
    %v1745 = vpop.f32.mrf.mxu0
    %v1746 = vadd.f32 %v1580, %v1745
    %v1747 = vpop.f32.mrf.mxu0
    %1748 = vdwg.mxu0
    %1749 = vmatpush.bf16.msra.mxu0 %v1697
    %1750 = vmatpush.bf16.msra.mxu0 %v1696
    %1751 = vmatpush.bf16.msra.mxu0 %v1695
    %1752 = vmatpush.bf16.msra.mxu0 %v1694
    %1753 = vmatpush.bf16.msra.mxu0 %v1693
    %1754 = vmatpush.bf16.msra.mxu0 %v1692
    %1755 = vmatpush.bf16.msra.mxu0 %v1691
    %1756 = vmatpush.bf16.msra.mxu0 %v1690
    %1757 = vmatmul.bf16.gmra.mxu0 %v1525
    %v1758 = vpop.f32.mrf.mxu0
    %v1759 = vadd.f32 %v1746, %v1758
    %v1760 = vpop.f32.mrf.mxu0
    %1761 = vdwg.mxu0
    %1762 = vmatpush.bf16.msra.mxu0 %v1705
    %1763 = vmatpush.bf16.msra.mxu0 %v1704
    %1764 = vmatpush.bf16.msra.mxu0 %v1703
    %1765 = vmatpush.bf16.msra.mxu0 %v1702
    %1766 = vmatpush.bf16.msra.mxu0 %v1701
    %1767 = vmatpush.bf16.msra.mxu0 %v1700
    %1768 = vmatpush.bf16.msra.mxu0 %v1699
    %1769 = vmatpush.bf16.msra.mxu0 %v1698
    %1770 = vmatmul.bf16.gmra.mxu0 %v1526
    %v1771 = vpop.f32.mrf.mxu0
    %v1772 = vadd.f32 %v1759, %v1771
    %v1773 = vpop.f32.mrf.mxu0
    %1774 = vdwg.mxu0
    %1775 = vmatpush.bf16.msra.mxu0 0
    %1776 = vmatpush.bf16.msra.mxu0 0
    %1777 = vmatpush.bf16.msra.mxu0 0
    %1778 = vmatpush.bf16.msra.mxu0 0
    %1779 = vmatpush.bf16.msra.mxu0 0
    %1780 = vmatpush.bf16.msra.mxu0 0
    %1781 = vmatpush.bf16.msra.mxu0 0
    %1782 = vmatpush.bf16.msra.mxu0 %v1706
    %1783 = vmatmul.bf16.gmra.mxu0 %v1734
    %v1784 = vpop.f32.mrf.mxu0
    %v1785 = vadd.f32 %v1772, %v1784
    %v1786 = vpop.f32.mrf.mxu0
    %1787 = vdwg.mxu0
    %v1788 = vxor.u32 %v1785, 2147483648
    %v1789 = vmul.f32 %v1788, 1.442695
    %v1790 = vpow.pop %v1789
    %v1791 = vadd.f32 %v1790, 1.0
    %v1792 = vrcp.pop %v1791
    %v1793 = vmul.f32 %v1791, %v1792
    %v1794 = vsub.f32 1.0, %v1793
    %v1795 = vmul.f32 %v1792, %v1794
    %v1796 = vadd.f32 %v1792, %v1795
    %vm1797 = vweird.f32 %v1791
    %vm1798 = vweird.f32 %v1792
    %vm1799 = vmor %vm1797, %vm1798
    %v1800 = vsel %vm1799, %v1792, %v1796
    %v1801 = vand.u32 2147483647, %v1791
    %vm1802 = vcmp.eq.f32.partialorder %v1801, 8.507059e+37
    %v1803 = vand.u32 %v1791, 2147483648
    %v1804 = vor.u32 1.1754944e-38, %v1803
    %v1805 = vsel %vm1802, %v1804, %v1800
    %v1806 = vmul.f32 1.0, %v1805
    %vm1807 = vcmask 80896
    %1808 = vst.msk [vmem:[#allocation2] sm:$0xff] %vm1807, %v1806
    // Predicated region
    $region22: #{tpu_custom_call.1} parent=1 // pred_check
      _
    $region23: #{tpu_custom_call.1} parent=1 // pred_check_branch
      %1810 = sbr.rel (0) target = $region25
    $region24: #{tpu_custom_call.1} parent=1 // pred_region
      %1812 = vsyncadd [#allocation3], 0
      %s1814 = sshll.u32 [#allocation2], 4
      %s1815 = int_to_ptr.vmem [resolvable:$true] %s1814
      %s1816 = sshll.u32 %s5, 4
      %s1817 = int_to_ptr.hbm [resolvable:$true] %s1816
      %1819 = dma.vmem_to_hbm [thread:$0]  %s1815, 128, %s1817, [#allocation3]
    $region25: #{tpu_custom_call.1} parent=1 // pred_fallthru
      _
    // Predicated region
    $region26: #{tpu_custom_call.1} parent=1 // pred_check
      _
    $region27: #{tpu_custom_call.1} parent=1 // pred_check_branch
      %1821 = sbr.rel (0) target = $region29
    $region28: #{tpu_custom_call.1} parent=1 // pred_region
      %1823 = dma.done [#allocation3], 128
    $region29: #{tpu_custom_call.1} parent=1 // pred_fallthru
      _
    %1824 = vsyncpa [#allocation3], 1

</llo_original>
